<compile_context>
chip_gen: v7x
topology: tpu7x:2x2x1
jax: 0.10.0
libtpu: 0.0.40
codegen_flags: <defaults>
</compile_context>

<pallas_src>
import jax
import jax.numpy as jnp
from jax.experimental import pallas as pl
from jax.experimental.pallas import tpu as pltpu


_ROW_ALIGN = 16   # bf16-friendly sublane multiple for row tiles
_LANE = 128


def _round_up(x, m):
    return (x + m - 1) // m * m


def _mix_pool_project_kernel(weight_ref, e_ref, hidden_ref, proj_ref, out_ref):
    # weight_ref: VMEM (tm, 128)      bf16  pooling weights mask * 1/len, zero-padded lanes
    # e_ref:      VMEM (128, L*FHp)   bf16  constant 0/1 expansion matrix (subtoken -> lane)
    # hidden_ref: VMEM (tm, L*FHp)    bf16  per-row all-layer hidden states, lane-dense
    # proj_ref:   VMEM (L*FHp, Op)    bf16  stacked projection, gamma*softmax(w)_l folded in
    # out_ref:    VMEM (tm, Op)       bf16  lane-dense output
    #
    # Expand per-subtoken pooling weights onto the folded (layer, subtoken, hidden) lane
    # axis with a tiny MXU matmul (keeps the VPU slot free).
    wl = jnp.dot(weight_ref[...], e_ref[...], preferred_element_type=jnp.float32)
    # Single f32 element-wise multiply (v5e-safe), then bf16 operands for the big matmul.
    lhs = (hidden_ref[...].astype(jnp.float32) * wl).astype(jnp.bfloat16)
    # ScalarMix layer-sum + masked mean-pool + projection fused into ONE MXU contraction:
    #   out[n, o] = sum_{l,f,h} hidden[n, l,f,h] * wt[n, f] * w_l * proj[h, o]
    out_ref[...] = jnp.dot(lhs, proj_ref[...],
                           preferred_element_type=jnp.float32).astype(out_ref.dtype)


def transformer_embedding_forward(subwords, layer_tables, scalar_w, gamma, proj_w,
                                  pad_index=0, tm=512, hidden_vmem_budget=None):
    """subwords: [B, S, F] int32 -> [B, S, n_out] float32."""
    B, S, F = subwords.shape
    L, V, H = layer_tables.shape
    n_out = proj_w.shape[1]
    assert F <= _LANE, "fix_len must fit within one 128-lane block"
    N = B * S
    FH = F * H
    FHp = _round_up(FH, _LANE)
    LFHp = L * FHp
    n_out_p = _round_up(n_out, _LANE)

    # ---- chip-aware VMEM: clamp everything below physical capacity (v7x = 64 MiB) ----
    try:
        vmem_cap = int(pltpu.get_tpu_info().vmem_capacity_bytes)
    except Exception:
        vmem_cap = 64 << 20
    if hidden_vmem_budget is None:
        # v7x: smaller tiles (half the VMEM; 2 TCs + 3.2 TB/s HBM do the work).
        # v5e/v6e: 128 MiB VMEM, mem-bound roofline favours ~512-row tiles.
        hidden_vmem_budget = (16 << 20) if vmem_cap <= (64 << 20) else (48 << 20)

    # ---- row-tile size: as large as the budget allows, but keep the grid >= 2 steps so
    #      the 'parallel' axis can shard across v7x's two TensorCores / overlap DMA ----
    per_row = 2 * (LFHp + _LANE + n_out_p) * 2          # double-buffered bf16 bytes / row
    cap = max(_ROW_ALIGN, (hidden_vmem_budget // per_row) // _ROW_ALIGN * _ROW_ALIGN)
    tm = min(max(_ROW_ALIGN, tm), cap)
    tm = min(tm, max(_ROW_ALIGN, _round_up(pl.cdiv(N, 2), _ROW_ALIGN)))
    Np = _round_up(N, tm)                               # ragged N -> pad rows

    # ---- XLA glue: padding, masks, pooling weights ----
    ids = subwords.reshape(N, F)
    ids = jnp.pad(ids, ((0, Np - N), (0, 0)), constant_values=pad_index)
    mask = (ids != pad_index).astype(jnp.float32)                          # (Np, F)
    inv_len = 1.0 / jnp.maximum(mask.sum(-1, keepdims=True), 1.0)
    weight = mask * inv_len                                                # (Np, F)
    weight = jnp.pad(weight, ((0, 0), (0, _LANE - F))).astype(jnp.bfloat16)  # (Np, 128)

    # Synthetic per-layer hidden states (stand-in for the pretrained transformer forward),
    # stored bf16, row-major (Np, L*FHp) so each row tile is one contiguous HBM slab.
    hid = layer_tables.astype(jnp.bfloat16)[:, ids.reshape(-1), :]         # (L, Np*F, H)
    hid = hid.reshape(L, Np, FH)
    if FHp != FH:
        hid = jnp.pad(hid, ((0, 0), (0, 0), (0, FHp - FH)))
    hidden = jnp.transpose(hid, (1, 0, 2)).reshape(Np, LFHp)               # (Np, L*FHp)

    # Constant expansion matrix: E[f, l*FHp + f*H + h] = 1  (subtoken weight -> lanes).
    rows = jax.lax.broadcasted_iota(jnp.int32, (_LANE, FHp), 0)
    cols = jax.lax.broadcasted_iota(jnp.int32, (_LANE, FHp), 1)
    e_block = ((cols // H == rows) & (cols < FH)).astype(jnp.float32)
    e_mat = jnp.tile(e_block, (1, L)).astype(jnp.bfloat16)                 # (128, L*FHp)

    # Stacked projection with ScalarMix folded in:
    #   P[l*FHp + f*H + h, o] = gamma * softmax(scalar_w)_l * proj_w[h, o]
    w = (gamma * jax.nn.softmax(scalar_w)).astype(jnp.float32)             # (L,)
    proj_block = jnp.tile(proj_w.astype(jnp.float32), (F, 1))              # (F*H, n_out)
    proj_block = jnp.pad(proj_block, ((0, FHp - FH), (0, n_out_p - n_out)))
    proj_stacked = (w[:, None, None] * proj_block[None]).reshape(LFHp, n_out_p)
    proj_stacked = proj_stacked.astype(jnp.bfloat16)                       # (L*FHp, Op)

    grid = (Np // tm,)
    vmem_bytes = (2 * tm * (LFHp + _LANE + n_out_p) * 2        # double-buffered row tiles
                  + 2 * (_LANE * LFHp + LFHp * n_out_p) * 2)   # constant E / proj blocks
    usable = max(16 << 20, vmem_cap - (8 << 20))               # headroom for Mosaic scratch
    vmem_limit = int(min(usable, max(32 << 20, vmem_bytes + (4 << 20))))

    out = pl.pallas_call(
        _mix_pool_project_kernel,
        out_shape=jax.ShapeDtypeStruct((Np, n_out_p), jnp.bfloat16),
        grid_spec=pltpu.PrefetchScalarGridSpec(
            num_scalar_prefetch=0,
            grid=grid,
            in_specs=[
                pl.BlockSpec((tm, _LANE), lambda i: (i, 0)),       # pooling weights (bf16)
                pl.BlockSpec((_LANE, LFHp), lambda i: (0, 0)),     # expansion matrix E
                pl.BlockSpec((tm, LFHp), lambda i: (i, 0)),        # hidden (bf16, dense)
                pl.BlockSpec((LFHp, n_out_p), lambda i: (0, 0)),   # stacked projection
            ],
            out_specs=pl.BlockSpec((tm, n_out_p), lambda i: (i, 0)),
        ),
        compiler_params=pltpu.CompilerParams(
            dimension_semantics=("parallel",),
            vmem_limit_bytes=vmem_limit,
        ),
    )(weight, e_mat, hidden, proj_stacked)

    return out[:N, :n_out].astype(jnp.float32).reshape(B, S, n_out)


def _reference(subwords, layer_tables, scalar_w, gamma, proj_w, pad_index=0):
    B, S, F = subwords.shape
    L, V, H = layer_tables.shape
    mask = (subwords != pad_index)
    # Same bf16 storage precision for hidden states as the kernel path, f32 math after.
    tabs = layer_tables.astype(jnp.bfloat16).astype(jnp.float32)
    hid = tabs[:, subwords.reshape(-1), :].reshape(L, B, S, F, H)
    w = gamma * jax.nn.softmax(scalar_w)
    mix = jnp.einsum('l,lbsfh->bsfh', w, hid)
    mix = mix * mask[..., None].astype(mix.dtype)
    lens = jnp.maximum(mask.sum(-1), 1).astype(jnp.float32)
    pooled = mix.sum(2) / lens[..., None]
    return pooled @ proj_w


if __name__ == "__main__":
    # small shapes consistent with the module's forward
    B, S, F = 2, 16, 4         # batch, seq_len, fix_len
    H, n_out = 32, 16          # hidden_size, requested n_out
    L, V = 3, 64               # n_layers, synthetic vocab
    pad_index = 0

    key = jax.random.PRNGKey(0)
    k_ids, k_tab, k_w, k_proj = jax.random.split(key, 4)

    # subword ids in [1, V); pad some subtoken slots and one whole word
    subwords = jax.random.randint(k_ids, (B, S, F), 1, V, dtype=jnp.int32)
    subwords = subwords.at[:, :, 2:].set(pad_index)        # only 2 subtokens per word
    subwords = subwords.at[1, S - 1, :].set(pad_index)     # fully padded word (len clamp)

    # deterministic synthetic parameters
    layer_tables = jax.random.normal(k_tab, (L, V, H), dtype=jnp.float32) * 0.1
    scalar_w = jax.random.normal(k_w, (L,), dtype=jnp.float32) * 0.5   # ScalarMix weights
    gamma = jnp.float32(1.0)                                           # ScalarMix gamma
    proj_w_pt = jax.random.normal(k_proj, (n_out, H), dtype=jnp.float32) * 0.05
    proj_w = proj_w_pt.T                                               # (H, n_out)

    out = transformer_embedding_forward(subwords, layer_tables, scalar_w, gamma,
                                        proj_w, pad_index=pad_index)
    out = jax.block_until_ready(out)

    ref = _reference(subwords, layer_tables, scalar_w, gamma, proj_w, pad_index=pad_index)
    assert out.shape == (B, S, n_out)
    # bf16 matmul operands / bf16 output store -> loosened tolerance vs the f32 reference
    assert jnp.allclose(out, ref, atol=5e-3, rtol=5e-2), "mismatch vs reference"

    print("KERNEL_OK")
</pallas_src>

<mosaic_0001>
module attributes {stable_mosaic.version = 11 : i64} {
  func.func @_mix_pool_project_kernel(%arg0: i32, %arg1: memref<16x128xbf16, #tpu.memory_space<vmem>>, %arg2: memref<128x384xbf16, #tpu.memory_space<vmem>>, %arg3: memref<16x384xbf16, #tpu.memory_space<vmem>>, %arg4: memref<384x128xbf16, #tpu.memory_space<vmem>>, %arg5: memref<16x128xbf16, #tpu.memory_space<vmem>>) attributes {dimension_semantics = [#tpu.dimension_semantics<parallel>], iteration_bounds = array<i64: 2>, scalar_prefetch = 0 : i64, scratch_operands = 0 : i64, tpu.core_type = #tpu.core_type<tc>, window_params = [{transform_indices = @transform_0, window_bounds = array<i64: 16, 128>}, {pipeline_mode = #tpu.pipeline_mode<synchronous>, transform_indices = @transform_1, window_bounds = array<i64: 128, 384>}, {transform_indices = @transform_2, window_bounds = array<i64: 16, 384>}, {pipeline_mode = #tpu.pipeline_mode<synchronous>, transform_indices = @transform_3, window_bounds = array<i64: 384, 128>}, {transform_indices = @transform_4, window_bounds = array<i64: 16, 128>}]} {
    %c0 = arith.constant 0 : index
    %c0_0 = arith.constant 0 : index
    %0 = vector.load %arg1[%c0, %c0_0] : memref<16x128xbf16, #tpu.memory_space<vmem>>, vector<16x128xbf16>
    %c0_1 = arith.constant 0 : index
    %c0_2 = arith.constant 0 : index
    %1 = vector.load %arg2[%c0_1, %c0_2] : memref<128x384xbf16, #tpu.memory_space<vmem>>, vector<128x384xbf16>
    %cst = arith.constant dense<0.000000e+00> : vector<16x384xf32>
    %2 = tpu.matmul %0, %1, %cst {dimension_numbers = #tpu.dot_dimension_numbers<[1], [0], [0], [1], [0, 0, 1, 1], [], []>} : vector<16x128xbf16>, vector<128x384xbf16>, vector<16x384xf32> -> vector<16x384xf32>
    %c0_3 = arith.constant 0 : index
    %c0_4 = arith.constant 0 : index
    %3 = vector.load %arg3[%c0_3, %c0_4] : memref<16x384xbf16, #tpu.memory_space<vmem>>, vector<16x384xbf16>
    %4 = arith.extf %3 : vector<16x384xbf16> to vector<16x384xf32>
    %5 = arith.mulf %4, %2 : vector<16x384xf32>
    %6 = arith.truncf %5 : vector<16x384xf32> to vector<16x384xbf16>
    %c0_5 = arith.constant 0 : index
    %c0_6 = arith.constant 0 : index
    %7 = vector.load %arg4[%c0_5, %c0_6] : memref<384x128xbf16, #tpu.memory_space<vmem>>, vector<384x128xbf16>
    %cst_7 = arith.constant dense<0.000000e+00> : vector<16x128xf32>
    %8 = tpu.matmul %6, %7, %cst_7 {dimension_numbers = #tpu.dot_dimension_numbers<[1], [0], [0], [1], [0, 0, 1, 1], [], []>} : vector<16x384xbf16>, vector<384x128xbf16>, vector<16x128xf32> -> vector<16x128xf32>
    %9 = arith.truncf %8 : vector<16x128xf32> to vector<16x128xbf16>
    %c0_8 = arith.constant 0 : index
    %c0_9 = arith.constant 0 : index
    %10 = vector.load %arg5[%c0_8, %c0_9] : memref<16x128xbf16, #tpu.memory_space<vmem>>, vector<16x128xbf16>
    tpu.vector_store %arg5[%c0_8, %c0_9], %9 {strides = array<i32>} : memref<16x128xbf16, #tpu.memory_space<vmem>>, vector<16x128xbf16>,
    return
  }
  func.func @transform_0(%arg0: i32) -> (i32, i32) {
    %c0_i32 = arith.constant 0 : i32
    %c0_i32_0 = arith.constant 0 : i32
    return %arg0, %c0_i32 : i32, i32
  }
  func.func @transform_1(%arg0: i32) -> (i32, i32) {
    %c0_i32 = arith.constant 0 : i32
    %c0_i32_0 = arith.constant 0 : i32
    %c0_i32_1 = arith.constant 0 : i32
    return %c0_i32, %c0_i32_0 : i32, i32
  }
  func.func @transform_2(%arg0: i32) -> (i32, i32) {
    %c0_i32 = arith.constant 0 : i32
    %c0_i32_0 = arith.constant 0 : i32
    return %arg0, %c0_i32 : i32, i32
  }
  func.func @transform_3(%arg0: i32) -> (i32, i32) {
    %c0_i32 = arith.constant 0 : i32
    %c0_i32_0 = arith.constant 0 : i32
    %c0_i32_1 = arith.constant 0 : i32
    return %c0_i32, %c0_i32_0 : i32, i32
  }
  func.func @transform_4(%arg0: i32) -> (i32, i32) {
    %c0_i32 = arith.constant 0 : i32
    %c0_i32_0 = arith.constant 0 : i32
    return %arg0, %c0_i32 : i32, i32
  }
}

</mosaic_0001>

<llo_original>
// kernel: tpu_custom_call.1
$region0: #{tpu_custom_call.1}
  #allocation0 [shape = 'u32[]', space=smem, size = 0x4, offset = 0x4, fixed_abs, tag = 'smem constant byte address 0x4 - core index']
  #allocation1 [shape = 'u32[144,128]{1,0:T(1,128)}', space=vmem, size = 0x12000, scoped, tag = 'internal scratch']
  %s0 = inlined_call_operand.hbm [shape: bf16[32,128], index: 0, kind: input, shape index: {}]
  %s1 = inlined_call_operand.hbm [shape: bf16[128,384], index: 1, kind: input, shape index: {}]
  %s2 = inlined_call_operand.hbm [shape: bf16[32,384], index: 2, kind: input, shape index: {}]
  %s3 = inlined_call_operand.hbm [shape: bf16[384,128], index: 3, kind: input, shape index: {}]
  %s4 = inlined_call_operand.hbm [shape: bf16[32,128], index: 4, kind: output, shape index: {}]
  %s5 = sld [smem:[#allocation0]]
  $region65: #{tpu_custom_call.1} parent=0
    _
  %s7 = ssub.s32 1, %s5
  %s8 = scalar_select 0, %s7, %s5
  $region1: #{tpu_custom_call.1} parent=0
    #allocation2 [shape = 'u8[8192]{0}', space=vmem, size = 0x2000, scoped, tag = 'input window, operand 0']
    #allocation3 [shape = 's32[2]{0}', space=sflag, size = 0x8, scoped, tag = 'scoped memory for tpu_custom_call.1']
    #allocation4 [shape = 's32[2]{0}', space=sflag, size = 0x8, scoped, tag = 'scoped memory for tpu_custom_call.1']
    #allocation5 [shape = 'u8[98304]{0}', space=vmem, size = 0x18000, scoped, tag = 'input window, operand 1, single buffered']
    #allocation6 [shape = 's32[1]{0}', space=sflag, size = 0x4, scoped, tag = 'scoped memory for tpu_custom_call.1']
    #allocation7 [shape = 'u8[24576]{0}', space=vmem, size = 0x6000, scoped, tag = 'input window, operand 2']
    #allocation8 [shape = 'u8[98304]{0}', space=vmem, size = 0x18000, scoped, tag = 'input window, operand 3, single buffered']
    #allocation9 [shape = 'u8[8192]{0}', space=vmem, size = 0x2000, scoped, tag = 'output window, operand 0']
    %9 = vsyncpa [#allocation3], 0
    %s10 = scalar_lea.sflag [#allocation3], 1
    %11 = vsyncpa %s10, 0
    %12 = vsyncpa [#allocation6], 0
    %13 = vsyncpa [#allocation4], 0
    %s14 = scalar_lea.sflag [#allocation4], 1
    %15 = vsyncpa %s14, 0
    loop: start=0, step=1, limit=4
    $region2: #{tpu_custom_call.1} parent=1 // loop_pre_header
      _
    $region3: #{tpu_custom_call.1} parent=1 // loop_header
      %s17 = sphi 0, %s21
      %p18 = scmp.ge.s32.totalorder %s17, 4
      %s27 = sphi 0, %s29
      %s30 = sphi 0, %s27
      %s31 = sphi 0, %s30
      %s47 = sphi 0, %s31
      %s51 = sphi 0, %s51
      %s53 = sphi 0, %s51
      %s54 = sphi 0, %s53
      %s68 = sphi 0, %s54
      %s74 = sphi 0, %s76
      %s77 = sphi 0, %s74
      %s78 = sphi 0, %s77
      %s94 = sphi 0, %s78
      %s98 = sphi 0, %s98
      %s100 = sphi 0, %s98
      %s101 = sphi 0, %s100
      %s115 = sphi 0, %s101
      %s121 = sphi 0, %s123
      %s124 = sphi 0, %s121
      %s125 = sphi 0, %s124
      %s141 = sphi 0, %s125
    $region4: #{tpu_custom_call.1} parent=1 // loop_header_branch
      %20 = sbr.rel (%p18) target = $region8
    $region5: #{tpu_custom_call.1} parent=1 // loop_body
      %s22 = ssub.s32 %s17, 1
      %s23 = ssub.s32 %s17, 2
      %s24 = sadd.s32 %s17, 1
      %s25 = ssub.s32 %s17, %s24
      %p26 = scmp.eq.s32.totalorder %s25, 0
      %s28 = sadd.s32 %s27, 1
      %s29 = scalar_select %p26, %s27, %s28
      %p32 = pneg %p26
      %p33 = scmp.eq.s32.totalorder %s17, 1
      %p34 = por %p32, %p33
      %p35 = scmp.ne.s32.totalorder %s27, %s30
      %p36 = scmp.eq.s32.totalorder %s17, 0
      %p37 = por %p35, %p36
      %p38 = scmp.ne.s32.totalorder %s27, %s30
      %p39 = scmp.eq.s32.totalorder %s22, 1
      %p40 = por %p38, %p39
      %p41 = scmp.ne.s32.totalorder %s30, %s31
      %p42 = scmp.eq.s32.totalorder %s22, 0
      %p43 = por %p41, %p42
      %p44 = scmp.ne.s32.totalorder %s30, %s31
      %p45 = scmp.eq.s32.totalorder %s23, 1
      %p46 = por %p44, %p45
      %p48 = scmp.ne.s32.totalorder %s31, %s47
      %p49 = scmp.eq.s32.totalorder %s23, 0
      %p50 = por %p48, %p49
      %s52 = sadd.s32 %s51, 1
      %p55 = scmp.eq.s32.totalorder %s17, 1
      %p56 = scmp.ne.s32.totalorder %s51, %s53
      %p57 = scmp.eq.s32.totalorder %s17, 0
      %p58 = por %p56, %p57
      %p59 = scmp.ne.s32.totalorder %s51, %s53
      %p60 = scmp.eq.s32.totalorder %s22, 1
      %p61 = por %p59, %p60
      %p62 = scmp.ne.s32.totalorder %s53, %s54
      %p63 = scmp.eq.s32.totalorder %s22, 0
      %p64 = por %p62, %p63
      %p65 = scmp.ne.s32.totalorder %s53, %s54
      %p66 = scmp.eq.s32.totalorder %s23, 1
      %p67 = por %p65, %p66
      %p69 = scmp.ne.s32.totalorder %s54, %s68
      %p70 = scmp.eq.s32.totalorder %s23, 0
      %p71 = por %p69, %p70
      %s72 = ssub.s32 %s17, %s24
      %p73 = scmp.eq.s32.totalorder %s72, 0
      %s75 = sadd.s32 %s74, 1
      %s76 = scalar_select %p73, %s74, %s75
      %p79 = pneg %p73
      %p80 = scmp.eq.s32.totalorder %s17, 1
      %p81 = por %p79, %p80
      %p82 = scmp.ne.s32.totalorder %s74, %s77
      %p83 = scmp.eq.s32.totalorder %s17, 0
      %p84 = por %p82, %p83
      %p85 = scmp.ne.s32.totalorder %s74, %s77
      %p86 = scmp.eq.s32.totalorder %s22, 1
      %p87 = por %p85, %p86
      %p88 = scmp.ne.s32.totalorder %s77, %s78
      %p89 = scmp.eq.s32.totalorder %s22, 0
      %p90 = por %p88, %p89
      %p91 = scmp.ne.s32.totalorder %s77, %s78
      %p92 = scmp.eq.s32.totalorder %s23, 1
      %p93 = por %p91, %p92
      %p95 = scmp.ne.s32.totalorder %s78, %s94
      %p96 = scmp.eq.s32.totalorder %s23, 0
      %p97 = por %p95, %p96
      %s99 = sadd.s32 %s98, 1
      %p102 = scmp.eq.s32.totalorder %s17, 1
      %p103 = scmp.ne.s32.totalorder %s98, %s100
      %p104 = scmp.eq.s32.totalorder %s17, 0
      %p105 = por %p103, %p104
      %p106 = scmp.ne.s32.totalorder %s98, %s100
      %p107 = scmp.eq.s32.totalorder %s22, 1
      %p108 = por %p106, %p107
      %p109 = scmp.ne.s32.totalorder %s100, %s101
      %p110 = scmp.eq.s32.totalorder %s22, 0
      %p111 = por %p109, %p110
      %p112 = scmp.ne.s32.totalorder %s100, %s101
      %p113 = scmp.eq.s32.totalorder %s23, 1
      %p114 = por %p112, %p113
      %p116 = scmp.ne.s32.totalorder %s101, %s115
      %p117 = scmp.eq.s32.totalorder %s23, 0
      %p118 = por %p116, %p117
      %s119 = ssub.s32 %s17, %s24
      %p120 = scmp.eq.s32.totalorder %s119, 0
      %s122 = sadd.s32 %s121, 1
      %s123 = scalar_select %p120, %s121, %s122
      %p126 = pneg %p120
      %p127 = scmp.eq.s32.totalorder %s17, 1
      %p128 = por %p126, %p127
      %p129 = scmp.ne.s32.totalorder %s121, %s124
      %p130 = scmp.eq.s32.totalorder %s17, 0
      %p131 = por %p129, %p130
      %p132 = scmp.ne.s32.totalorder %s121, %s124
      %p133 = scmp.eq.s32.totalorder %s22, 1
      %p134 = por %p132, %p133
      %p135 = scmp.ne.s32.totalorder %s124, %s125
      %p136 = scmp.eq.s32.totalorder %s22, 0
      %p137 = por %p135, %p136
      %p138 = scmp.ne.s32.totalorder %s124, %s125
      %p139 = scmp.eq.s32.totalorder %s23, 1
      %p140 = por %p138, %p139
      %p142 = scmp.ne.s32.totalorder %s125, %s141
      %p143 = scmp.eq.s32.totalorder %s23, 0
      %p144 = por %p142, %p143
      %p145 = scmp.le.s32.totalorder 1, %s17
      %p146 = scmp.lt.s32.totalorder %s17, 3
      %p147 = pnand %p145, %p146
      %p148 = pneg %p147
      // Predicated region
      $region9: #{tpu_custom_call.1} parent=5 // pred_check
        _
      $region10: #{tpu_custom_call.1} parent=5 // pred_check_branch
        %150 = sbr.rel (%p147) target = $region12
      $region11: #{tpu_custom_call.1} parent=5 // pred_region
        %s151 = ssub.s32 %s17, 1
        // Predicated region
        $region13: #{tpu_custom_call.1} parent=11 // pred_check
          %p152 = pneg %p64
        $region14: #{tpu_custom_call.1} parent=11 // pred_check_branch
          %154 = sbr.rel (%p152) target = $region16
        $region15: #{tpu_custom_call.1} parent=11 // pred_region
          %s156 = ssub.s32 3072, 3072
          %157 = vsyncadd [#allocation6], %s156
          %s158 = sshll.u32 [#allocation5], 4
          %s159 = int_to_ptr.vmem [resolvable:$true] %s158
          %164 = dma.hbm_to_vmem [thread:$0]  %s1, 3072, %s159, [#allocation6], 192, 192, 12
        $region16: #{tpu_custom_call.1} parent=11 // pred_fallthru
          _
        // Predicated region
        $region17: #{tpu_custom_call.1} parent=11 // pred_check
          %p165 = pneg %p111
        $region18: #{tpu_custom_call.1} parent=11 // pred_check_branch
          %167 = sbr.rel (%p165) target = $region20
        $region19: #{tpu_custom_call.1} parent=11 // pred_region
          %s169 = ssub.s32 3072, 3072
          %170 = vsyncadd [#allocation6], %s169
          %s171 = sshll.u32 [#allocation8], 4
          %s172 = int_to_ptr.vmem [resolvable:$true] %s171
          %177 = dma.hbm_to_vmem [thread:$0]  %s3, 3072, %s172, [#allocation6], 64, 64, 4
        $region20: #{tpu_custom_call.1} parent=11 // pred_fallthru
          _
      $region12: #{tpu_custom_call.1} parent=5 // pred_fallthru
        _
      %p178 = scmp.lt.s32.totalorder %s17, 2
      // Predicated region
      $region21: #{tpu_custom_call.1} parent=5 // pred_check
        %p179 = pneg %p178
      $region22: #{tpu_custom_call.1} parent=5 // pred_check_branch
        %181 = sbr.rel (%p179) target = $region24
      $region23: #{tpu_custom_call.1} parent=5 // pred_region
        // Predicated region
        $region25: #{tpu_custom_call.1} parent=23 // pred_check
          %p182 = pneg %p37
        $region26: #{tpu_custom_call.1} parent=23 // pred_check_branch
          %184 = sbr.rel (%p182) target = $region28
        $region27: #{tpu_custom_call.1} parent=23 // pred_region
          %s185 = sand.u32 %s17, 1
          %s186 = scalar_lea.sflag [#allocation3], %s185
          %s187 = sand.u32 %s27, 1
          %s188 = smul.addr %s187, 8
          %s189 = scalar_lea.vmem [#allocation2], %s188
          %s190 = smul.u32 2, %s17
          %s192 = ssub.s32 128, 128
          %193 = vsyncadd %s186, %s192
          %s194 = smul.addr %s190, 64
          %s195 = scalar_lea.hbm %s0, %s194
          %s196 = sshll.u32 %s189, 4
          %s197 = int_to_ptr.vmem [resolvable:$true] %s196
          %202 = dma.hbm_to_vmem [thread:$0]  %s195, 128, %s197, %s186, 64, 64, 4
        $region28: #{tpu_custom_call.1} parent=23 // pred_fallthru
          _
        // Predicated region
        $region29: #{tpu_custom_call.1} parent=23 // pred_check
          %p203 = pneg %p84
        $region30: #{tpu_custom_call.1} parent=23 // pred_check_branch
          %205 = sbr.rel (%p203) target = $region32
        $region31: #{tpu_custom_call.1} parent=23 // pred_region
          %s206 = sand.u32 %s17, 1
          %s207 = scalar_lea.sflag [#allocation3], %s206
          %s208 = sand.u32 %s74, 1
          %s209 = smul.addr %s208, 24
          %s210 = scalar_lea.vmem [#allocation7], %s209
          %s211 = smul.u32 2, %s17
          %s213 = ssub.s32 384, 384
          %214 = vsyncadd %s207, %s213
          %s215 = smul.addr %s211, 3
          %s216 = smul.addr %s215, 64
          %s217 = scalar_lea.hbm %s2, %s216
          %s218 = sshll.u32 %s210, 4
          %s219 = int_to_ptr.vmem [resolvable:$true] %s218
          %224 = dma.hbm_to_vmem [thread:$0]  %s217, 384, %s219, %s207, 192, 192, 12
        $region32: #{tpu_custom_call.1} parent=23 // pred_fallthru
          _
      $region24: #{tpu_custom_call.1} parent=5 // pred_fallthru
        _
      %p225 = scmp.le.s32.totalorder 1, %s17
      %p226 = scmp.lt.s32.totalorder %s17, 3
      %p227 = pnand %p225, %p226
      %p228 = pneg %p227
      // Predicated region
      $region33: #{tpu_custom_call.1} parent=5 // pred_check
        _
      $region34: #{tpu_custom_call.1} parent=5 // pred_check_branch
        %230 = sbr.rel (%p227) target = $region36
      $region35: #{tpu_custom_call.1} parent=5 // pred_region
        %s231 = ssub.s32 %s17, 1
        %s232 = sand.u32 %s22, 1
        %s233 = scalar_lea.sflag [#allocation3], %s232
        %s234 = sand.u32 %s30, 1
        %s235 = smul.addr %s234, 8
        %s236 = scalar_lea.vmem [#allocation2], %s235
        // Predicated region
        $region37: #{tpu_custom_call.1} parent=35 // pred_check
          %p237 = pneg %p43
        $region38: #{tpu_custom_call.1} parent=35 // pred_check_branch
          %239 = sbr.rel (%p237) target = $region40
        $region39: #{tpu_custom_call.1} parent=35 // pred_region
          %240 = dma.done %s233, 128
        $region40: #{tpu_custom_call.1} parent=35 // pred_fallthru
          _
        // Predicated region
        $region41: #{tpu_custom_call.1} parent=35 // pred_check
          %p241 = pneg %p64
        $region42: #{tpu_custom_call.1} parent=35 // pred_check_branch
          %243 = sbr.rel (%p241) target = $region44
        $region43: #{tpu_custom_call.1} parent=35 // pred_region
          %244 = dma.done [#allocation6], 3072
        $region44: #{tpu_custom_call.1} parent=35 // pred_fallthru
          _
        %s245 = sand.u32 %s22, 1
        %s246 = scalar_lea.sflag [#allocation3], %s245
        %s247 = sand.u32 %s77, 1
        %s248 = smul.addr %s247, 24
        %s249 = scalar_lea.vmem [#allocation7], %s248
        // Predicated region
        $region45: #{tpu_custom_call.1} parent=35 // pred_check
          %p250 = pneg %p90
        $region46: #{tpu_custom_call.1} parent=35 // pred_check_branch
          %252 = sbr.rel (%p250) target = $region48
        $region47: #{tpu_custom_call.1} parent=35 // pred_region
          %253 = dma.done %s246, 384
        $region48: #{tpu_custom_call.1} parent=35 // pred_fallthru
          _
        // Predicated region
        $region49: #{tpu_custom_call.1} parent=35 // pred_check
          %p254 = pneg %p111
        $region50: #{tpu_custom_call.1} parent=35 // pred_check_branch
          %256 = sbr.rel (%p254) target = $region52
        $region51: #{tpu_custom_call.1} parent=35 // pred_region
          %257 = dma.done [#allocation6], 3072
        $region52: #{tpu_custom_call.1} parent=35 // pred_fallthru
          _
        %s258 = sand.u32 %s22, 1
        %s259 = scalar_lea.sflag [#allocation3], %s258
        %s260 = sand.u32 %s30, 1
        %s261 = smul.addr %s260, 8
        %s262 = scalar_lea.vmem [#allocation2], %s261
        %p263 = pneg %p43
        %p264 = pneg %p40
        %p265 = pneg %p64
        %p266 = pneg %p61
        %s267 = sand.u32 %s22, 1
        %s268 = scalar_lea.sflag [#allocation3], %s267
        %s269 = sand.u32 %s77, 1
        %s270 = smul.addr %s269, 24
        %s271 = scalar_lea.vmem [#allocation7], %s270
        %p272 = pneg %p90
        %p273 = pneg %p87
        %p274 = pneg %p111
        %p275 = pneg %p108
        %p276 = pneg %p137
        %p277 = pneg %p134
        %s278 = sand.u32 %s124, 1
        %s279 = scalar_lea.sflag [#allocation4], %s278
        %s280 = sand.u32 %s124, 1
        %s281 = smul.addr %s280, 8
        %s282 = scalar_lea.vmem [#allocation9], %s281
        %s283 = smul.u32 2, %s22
        %s284 = smul.u32 2, %s22
        %s285 = smul.u32 2, %s22
        %v287 = vld [vmem:[%s236] sm:$0xf]
        %v288 = vld [vmem:[%s236 + $0x4] sm:$0xf]
        %v289 = vld [vmem:[#allocation5] sm:$0xff]
        %v290 = vld [vmem:[#allocation5 + $0x8] sm:$0xf]
        %v291 = vld [vmem:[#allocation5 + $0xc] sm:$0xff]
        %v292 = vld [vmem:[#allocation5 + $0x14] sm:$0xf]
        %v293 = vld [vmem:[#allocation5 + $0x18] sm:$0xff]
        %v294 = vld [vmem:[#allocation5 + $0x20] sm:$0xf]
        %v295 = vld [vmem:[#allocation5 + $0x24] sm:$0xff]
        %v296 = vld [vmem:[#allocation5 + $0x2c] sm:$0xf]
        %v297 = vld [vmem:[#allocation5 + $0x30] sm:$0xff]
        %v298 = vld [vmem:[#allocation5 + $0x38] sm:$0xf]
        %v299 = vld [vmem:[#allocation5 + $0x3c] sm:$0xff]
        %v300 = vld [vmem:[#allocation5 + $0x44] sm:$0xf]
        %v301 = vld [vmem:[#allocation5 + $0x48] sm:$0xff]
        %v302 = vld [vmem:[#allocation5 + $0x50] sm:$0xf]
        %v303 = vld [vmem:[#allocation5 + $0x54] sm:$0xff]
        %v304 = vld [vmem:[#allocation5 + $0x5c] sm:$0xf]
        %v305 = vld [vmem:[#allocation5 + $0x60] sm:$0xff]
        %v306 = vld [vmem:[#allocation5 + $0x68] sm:$0xf]
        %v307 = vld [vmem:[#allocation5 + $0x6c] sm:$0xff]
        %v308 = vld [vmem:[#allocation5 + $0x74] sm:$0xf]
        %v309 = vld [vmem:[#allocation5 + $0x78] sm:$0xff]
        %v310 = vld [vmem:[#allocation5 + $0x80] sm:$0xf]
        %v311 = vld [vmem:[#allocation5 + $0x84] sm:$0xff]
        %v312 = vld [vmem:[#allocation5 + $0x8c] sm:$0xf]
        %v313 = vld [vmem:[#allocation5 + $0x90] sm:$0xff]
        %v314 = vld [vmem:[#allocation5 + $0x98] sm:$0xf]
        %v315 = vld [vmem:[#allocation5 + $0x9c] sm:$0xff]
        %v316 = vld [vmem:[#allocation5 + $0xa4] sm:$0xf]
        %v317 = vld [vmem:[#allocation5 + $0xa8] sm:$0xff]
        %v318 = vld [vmem:[#allocation5 + $0xb0] sm:$0xf]
        %v319 = vld [vmem:[#allocation5 + $0xb4] sm:$0xff]
        %v320 = vld [vmem:[#allocation5 + $0xbc] sm:$0xf]
        %v323 = vunpack.c.l.b16 %v287
        %v324 = vunpack.c.l.b16 %v288
        %v325 = vpack.c.b16 %v324, %v323
        %v359 = vunpack.c.l.b16 %v289
        %v360 = vunpack.c.h.b16 %v289
        %v361 = vunpack.c.l.b16 %v290
        %v362 = vunpack.c.l.b16 %v291
        %v363 = vunpack.c.h.b16 %v291
        %v364 = vunpack.c.l.b16 %v292
        %v365 = vunpack.c.l.b16 %v293
        %v366 = vunpack.c.h.b16 %v293
        %v367 = vunpack.c.l.b16 %v294
        %v368 = vunpack.c.l.b16 %v295
        %v369 = vunpack.c.h.b16 %v295
        %v370 = vunpack.c.l.b16 %v296
        %v371 = vunpack.c.l.b16 %v297
        %v372 = vunpack.c.h.b16 %v297
        %v373 = vunpack.c.l.b16 %v298
        %v374 = vunpack.c.l.b16 %v299
        %v375 = vunpack.c.h.b16 %v299
        %v376 = vunpack.c.l.b16 %v300
        %v377 = vunpack.c.l.b16 %v301
        %v378 = vunpack.c.h.b16 %v301
        %v379 = vunpack.c.l.b16 %v302
        %v380 = vunpack.c.l.b16 %v303
        %v381 = vunpack.c.h.b16 %v303
        %v382 = vunpack.c.l.b16 %v304
        %v383 = vunpack.c.l.b16 %v305
        %v384 = vunpack.c.h.b16 %v305
        %v385 = vunpack.c.l.b16 %v306
        %v386 = vunpack.c.l.b16 %v307
        %v387 = vunpack.c.h.b16 %v307
        %v388 = vunpack.c.l.b16 %v308
        %v389 = vunpack.c.l.b16 %v309
        %v390 = vunpack.c.h.b16 %v309
        %v391 = vunpack.c.l.b16 %v310
        %v392 = vunpack.c.l.b16 %v311
        %v393 = vunpack.c.h.b16 %v311
        %v394 = vunpack.c.l.b16 %v312
        %v395 = vunpack.c.l.b16 %v313
        %v396 = vunpack.c.h.b16 %v313
        %v397 = vunpack.c.l.b16 %v314
        %v398 = vunpack.c.l.b16 %v315
        %v399 = vunpack.c.h.b16 %v315
        %v400 = vunpack.c.l.b16 %v316
        %v401 = vunpack.c.l.b16 %v317
        %v402 = vunpack.c.h.b16 %v317
        %v403 = vunpack.c.l.b16 %v318
        %v404 = vunpack.c.l.b16 %v319
        %v405 = vunpack.c.h.b16 %v319
        %v406 = vunpack.c.l.b16 %v320
        %v407 = vpack.c.b16 %v362, %v359
        %v408 = vpack.c.b16 %v363, %v360
        %v409 = vpack.c.b16 %v364, %v361
        %v410 = vpack.c.b16 %v368, %v365
        %v411 = vpack.c.b16 %v369, %v366
        %v412 = vpack.c.b16 %v370, %v367
        %v413 = vpack.c.b16 %v374, %v371
        %v414 = vpack.c.b16 %v375, %v372
        %v415 = vpack.c.b16 %v376, %v373
        %v416 = vpack.c.b16 %v380, %v377
        %v417 = vpack.c.b16 %v381, %v378
        %v418 = vpack.c.b16 %v382, %v379
        %v419 = vpack.c.b16 %v386, %v383
        %v420 = vpack.c.b16 %v387, %v384
        %v421 = vpack.c.b16 %v388, %v385
        %v422 = vpack.c.b16 %v392, %v389
        %v423 = vpack.c.b16 %v393, %v390
        %v424 = vpack.c.b16 %v394, %v391
        %v425 = vpack.c.b16 %v398, %v395
        %v426 = vpack.c.b16 %v399, %v396
        %v427 = vpack.c.b16 %v400, %v397
        %v428 = vpack.c.b16 %v404, %v401
        %v429 = vpack.c.b16 %v405, %v402
        %v430 = vpack.c.b16 %v406, %v403
        %455 = vmatprep.subr.bf16.mxu0 %v408
        %456 = vmatpush1.bf16.msra.mxu0 %v407
        %457 = vmatprep.subr.bf16.mxu0 %v411
        %458 = vmatpush1.bf16.msra.mxu0 %v410
        %459 = vmatprep.subr.bf16.mxu0 %v414
        %460 = vmatpush1.bf16.msra.mxu0 %v413
        %461 = vmatprep.subr.bf16.mxu0 %v417
        %462 = vmatpush1.bf16.msra.mxu0 %v416
        %463 = vmatprep.subr.bf16.mxu0 %v420
        %464 = vmatpush1.bf16.msra.mxu0 %v419
        %465 = vmatprep.subr.bf16.mxu0 %v423
        %466 = vmatpush1.bf16.msra.mxu0 %v422
        %467 = vmatprep.subr.bf16.mxu0 %v426
        %468 = vmatpush1.bf16.msra.mxu0 %v425
        %469 = vmatprep.subr.bf16.mxu0 %v429
        %470 = vmatpush1.bf16.msra.mxu0 %v428
        %471 = vmatprep.subr.bf16.mxu0 0
        %472 = vmatpush1.bf16.msra.mxu0 0
        %473 = vmatprep.subr.bf16.mxu0 0
        %474 = vmatpush1.bf16.msra.mxu0 0
        %475 = vmatprep.subr.bf16.mxu0 0
        %476 = vmatpush1.bf16.msra.mxu0 0
        %477 = vmatprep.subr.bf16.mxu0 0
        %478 = vmatpush1.bf16.msra.mxu0 0
        %479 = vmatprep.subr.bf16.mxu0 0
        %480 = vmatpush1.bf16.msra.mxu0 0
        %481 = vmatprep.subr.bf16.mxu0 0
        %482 = vmatpush1.bf16.msra.mxu0 0
        %483 = vmatprep.subr.bf16.mxu0 0
        %484 = vmatpush1.bf16.msra.mxu0 0
        %485 = vmatprep.subr.bf16.mxu0 0
        %486 = vmatpush1.bf16.msra.mxu0 0
        %487 = vmatprep.mubr.bf16.mxu0 0
        %488 = vmatmul.mubr.bf16.gmra.mrb[0].mxu0 %v325
        %v489 = vpop.f32.mrb[0].mxu0
        %v490 = vadd.f32 0.0, %v489
        %v491 = vpop.f32.mrb[0].mxu0
        %v492 = vadd.f32 0.0, %v491
        %v493 = vpop.f32.mrb[0].mxu0
        %v494 = vadd.f32 0.0, %v493
        %v495 = vpop.f32.mrb[0].mxu0
        %v496 = vadd.f32 0.0, %v495
        %497 = vdwg.mxu0
        %498 = vmatprep.subr.bf16.mxu0 0
        %499 = vmatpush1.bf16.msra.mxu0 %v409
        %500 = vmatprep.subr.bf16.mxu0 0
        %501 = vmatpush1.bf16.msra.mxu0 %v412
        %502 = vmatprep.subr.bf16.mxu0 0
        %503 = vmatpush1.bf16.msra.mxu0 %v415
        %504 = vmatprep.subr.bf16.mxu0 0
        %505 = vmatpush1.bf16.msra.mxu0 %v418
        %506 = vmatprep.subr.bf16.mxu0 0
        %507 = vmatpush1.bf16.msra.mxu0 %v421
        %508 = vmatprep.subr.bf16.mxu0 0
        %509 = vmatpush1.bf16.msra.mxu0 %v424
        %510 = vmatprep.subr.bf16.mxu0 0
        %511 = vmatpush1.bf16.msra.mxu0 %v427
        %512 = vmatprep.subr.bf16.mxu0 0
        %513 = vmatpush1.bf16.msra.mxu0 %v430
        %514 = vmatprep.subr.bf16.mxu0 0
        %515 = vmatpush1.bf16.msra.mxu0 0
        %516 = vmatprep.subr.bf16.mxu0 0
        %517 = vmatpush1.bf16.msra.mxu0 0
        %518 = vmatprep.subr.bf16.mxu0 0
        %519 = vmatpush1.bf16.msra.mxu0 0
        %520 = vmatprep.subr.bf16.mxu0 0
        %521 = vmatpush1.bf16.msra.mxu0 0
        %522 = vmatprep.subr.bf16.mxu0 0
        %523 = vmatpush1.bf16.msra.mxu0 0
        %524 = vmatprep.subr.bf16.mxu0 0
        %525 = vmatpush1.bf16.msra.mxu0 0
        %526 = vmatprep.subr.bf16.mxu0 0
        %527 = vmatpush1.bf16.msra.mxu0 0
        %528 = vmatprep.subr.bf16.mxu0 0
        %529 = vmatpush1.bf16.msra.mxu0 0
        %530 = vmatprep.mubr.bf16.mxu0 0
        %531 = vmatmul.mubr.bf16.gmra.mrb[0].mxu0 %v325
        %v532 = vpop.f32.mrb[0].mxu0
        %v533 = vadd.f32 0.0, %v532
        %v534 = vpop.f32.mrb[0].mxu0
        %v535 = vpop.f32.mrb[0].mxu0
        %v536 = vadd.f32 0.0, %v535
        %v537 = vpop.f32.mrb[0].mxu0
        %538 = vdwg.mxu0
        %v539 = vld [vmem:[%s249] sm:$0xff]
        %v540 = vld [vmem:[%s249 + $0x8] sm:$0xf]
        %v541 = vld [vmem:[%s249 + $0xc] sm:$0xff]
        %v542 = vld [vmem:[%s249 + $0x14] sm:$0xf]
        %v543 = vunpack.c.l.bf16 %v539
        %v544 = vunpack.c.h.bf16 %v539
        %v545 = vunpack.c.l.bf16 %v540
        %v546 = vunpack.c.l.bf16 %v541
        %v547 = vunpack.c.h.bf16 %v541
        %v548 = vunpack.c.l.bf16 %v542
        %v549 = vmul.f32 %v543, %v490
        %v550 = vmul.f32 %v544, %v492
        %v551 = vmul.f32 %v545, %v533
        %v552 = vmul.f32 %v546, %v494
        %v553 = vmul.f32 %v547, %v496
        %v554 = vmul.f32 %v548, %v536
        %v555 = vpack.c.bf16 %v552, %v549
        %v556 = vpack.c.bf16 %v553, %v550
        %v557 = vpack.c.bf16 %v554, %v551
        %v558 = vld [vmem:[#allocation8] sm:$0xf]
        %v559 = vld [vmem:[#allocation8 + $0x4] sm:$0xf]
        %v560 = vld [vmem:[#allocation8 + $0x8] sm:$0xf]
        %v561 = vld [vmem:[#allocation8 + $0xc] sm:$0xf]
        %v562 = vld [vmem:[#allocation8 + $0x10] sm:$0xf]
        %v563 = vld [vmem:[#allocation8 + $0x14] sm:$0xf]
        %v564 = vld [vmem:[#allocation8 + $0x18] sm:$0xf]
        %v565 = vld [vmem:[#allocation8 + $0x1c] sm:$0xf]
        %v566 = vld [vmem:[#allocation8 + $0x20] sm:$0xf]
        %v567 = vld [vmem:[#allocation8 + $0x24] sm:$0xf]
        %v568 = vld [vmem:[#allocation8 + $0x28] sm:$0xf]
        %v569 = vld [vmem:[#allocation8 + $0x2c] sm:$0xf]
        %v570 = vld [vmem:[#allocation8 + $0x30] sm:$0xf]
        %v571 = vld [vmem:[#allocation8 + $0x34] sm:$0xf]
        %v572 = vld [vmem:[#allocation8 + $0x38] sm:$0xf]
        %v573 = vld [vmem:[#allocation8 + $0x3c] sm:$0xf]
        %v574 = vld [vmem:[#allocation8 + $0x40] sm:$0xf]
        %v575 = vld [vmem:[#allocation8 + $0x44] sm:$0xf]
        %v576 = vld [vmem:[#allocation8 + $0x48] sm:$0xf]
        %v577 = vld [vmem:[#allocation8 + $0x4c] sm:$0xf]
        %v578 = vld [vmem:[#allocation8 + $0x50] sm:$0xf]
        %v579 = vld [vmem:[#allocation8 + $0x54] sm:$0xf]
        %v580 = vld [vmem:[#allocation8 + $0x58] sm:$0xf]
        %v581 = vld [vmem:[#allocation8 + $0x5c] sm:$0xf]
        %v582 = vld [vmem:[#allocation8 + $0x60] sm:$0xf]
        %v583 = vld [vmem:[#allocation8 + $0x64] sm:$0xf]
        %v584 = vld [vmem:[#allocation8 + $0x68] sm:$0xf]
        %v585 = vld [vmem:[#allocation8 + $0x6c] sm:$0xf]
        %v586 = vld [vmem:[#allocation8 + $0x70] sm:$0xf]
        %v587 = vld [vmem:[#allocation8 + $0x74] sm:$0xf]
        %v588 = vld [vmem:[#allocation8 + $0x78] sm:$0xf]
        %v589 = vld [vmem:[#allocation8 + $0x7c] sm:$0xf]
        %v590 = vld [vmem:[#allocation8 + $0x80] sm:$0xf]
        %v591 = vld [vmem:[#allocation8 + $0x84] sm:$0xf]
        %v592 = vld [vmem:[#allocation8 + $0x88] sm:$0xf]
        %v593 = vld [vmem:[#allocation8 + $0x8c] sm:$0xf]
        %v594 = vld [vmem:[#allocation8 + $0x90] sm:$0xf]
        %v595 = vld [vmem:[#allocation8 + $0x94] sm:$0xf]
        %v596 = vld [vmem:[#allocation8 + $0x98] sm:$0xf]
        %v597 = vld [vmem:[#allocation8 + $0x9c] sm:$0xf]
        %v598 = vld [vmem:[#allocation8 + $0xa0] sm:$0xf]
        %v599 = vld [vmem:[#allocation8 + $0xa4] sm:$0xf]
        %v600 = vld [vmem:[#allocation8 + $0xa8] sm:$0xf]
        %v601 = vld [vmem:[#allocation8 + $0xac] sm:$0xf]
        %v602 = vld [vmem:[#allocation8 + $0xb0] sm:$0xf]
        %v603 = vld [vmem:[#allocation8 + $0xb4] sm:$0xf]
        %v604 = vld [vmem:[#allocation8 + $0xb8] sm:$0xf]
        %v605 = vld [vmem:[#allocation8 + $0xbc] sm:$0xf]
        %v654 = vunpack.c.l.b16 %v558
        %v655 = vunpack.c.l.b16 %v559
        %v656 = vunpack.c.l.b16 %v560
        %v657 = vunpack.c.l.b16 %v561
        %v658 = vunpack.c.l.b16 %v562
        %v659 = vunpack.c.l.b16 %v563
        %v660 = vunpack.c.l.b16 %v564
        %v661 = vunpack.c.l.b16 %v565
        %v662 = vunpack.c.l.b16 %v566
        %v663 = vunpack.c.l.b16 %v567
        %v664 = vunpack.c.l.b16 %v568
        %v665 = vunpack.c.l.b16 %v569
        %v666 = vunpack.c.l.b16 %v570
        %v667 = vunpack.c.l.b16 %v571
        %v668 = vunpack.c.l.b16 %v572
        %v669 = vunpack.c.l.b16 %v573
        %v670 = vunpack.c.l.b16 %v574
        %v671 = vunpack.c.l.b16 %v575
        %v672 = vunpack.c.l.b16 %v576
        %v673 = vunpack.c.l.b16 %v577
        %v674 = vunpack.c.l.b16 %v578
        %v675 = vunpack.c.l.b16 %v579
        %v676 = vunpack.c.l.b16 %v580
        %v677 = vunpack.c.l.b16 %v581
        %v678 = vunpack.c.l.b16 %v582
        %v679 = vunpack.c.l.b16 %v583
        %v680 = vunpack.c.l.b16 %v584
        %v681 = vunpack.c.l.b16 %v585
        %v682 = vunpack.c.l.b16 %v586
        %v683 = vunpack.c.l.b16 %v587
        %v684 = vunpack.c.l.b16 %v588
        %v685 = vunpack.c.l.b16 %v589
        %v686 = vunpack.c.l.b16 %v590
        %v687 = vunpack.c.l.b16 %v591
        %v688 = vunpack.c.l.b16 %v592
        %v689 = vunpack.c.l.b16 %v593
        %v690 = vunpack.c.l.b16 %v594
        %v691 = vunpack.c.l.b16 %v595
        %v692 = vunpack.c.l.b16 %v596
        %v693 = vunpack.c.l.b16 %v597
        %v694 = vunpack.c.l.b16 %v598
        %v695 = vunpack.c.l.b16 %v599
        %v696 = vunpack.c.l.b16 %v600
        %v697 = vunpack.c.l.b16 %v601
        %v698 = vunpack.c.l.b16 %v602
        %v699 = vunpack.c.l.b16 %v603
        %v700 = vunpack.c.l.b16 %v604
        %v701 = vunpack.c.l.b16 %v605
        %v702 = vpack.c.b16 %v655, %v654
        %v703 = vpack.c.b16 %v657, %v656
        %v704 = vpack.c.b16 %v659, %v658
        %v705 = vpack.c.b16 %v661, %v660
        %v706 = vpack.c.b16 %v663, %v662
        %v707 = vpack.c.b16 %v665, %v664
        %v708 = vpack.c.b16 %v667, %v666
        %v709 = vpack.c.b16 %v669, %v668
        %v710 = vpack.c.b16 %v671, %v670
        %v711 = vpack.c.b16 %v673, %v672
        %v712 = vpack.c.b16 %v675, %v674
        %v713 = vpack.c.b16 %v677, %v676
        %v714 = vpack.c.b16 %v679, %v678
        %v715 = vpack.c.b16 %v681, %v680
        %v716 = vpack.c.b16 %v683, %v682
        %v717 = vpack.c.b16 %v685, %v684
        %v718 = vpack.c.b16 %v687, %v686
        %v719 = vpack.c.b16 %v689, %v688
        %v720 = vpack.c.b16 %v691, %v690
        %v721 = vpack.c.b16 %v693, %v692
        %v722 = vpack.c.b16 %v695, %v694
        %v723 = vpack.c.b16 %v697, %v696
        %v724 = vpack.c.b16 %v699, %v698
        %v725 = vpack.c.b16 %v701, %v700
        %750 = vmatprep.subr.bf16.mxu0 0
        %751 = vmatpush1.bf16.msra.mxu0 %v702
        %752 = vmatprep.subr.bf16.mxu0 0
        %753 = vmatpush1.bf16.msra.mxu0 %v703
        %754 = vmatprep.subr.bf16.mxu0 0
        %755 = vmatpush1.bf16.msra.mxu0 %v704
        %756 = vmatprep.subr.bf16.mxu0 0
        %757 = vmatpush1.bf16.msra.mxu0 %v705
        %758 = vmatprep.subr.bf16.mxu0 0
        %759 = vmatpush1.bf16.msra.mxu0 %v706
        %760 = vmatprep.subr.bf16.mxu0 0
        %761 = vmatpush1.bf16.msra.mxu0 %v707
        %762 = vmatprep.subr.bf16.mxu0 0
        %763 = vmatpush1.bf16.msra.mxu0 %v708
        %764 = vmatprep.subr.bf16.mxu0 0
        %765 = vmatpush1.bf16.msra.mxu0 %v709
        %766 = vmatprep.subr.bf16.mxu0 0
        %767 = vmatpush1.bf16.msra.mxu0 %v710
        %768 = vmatprep.subr.bf16.mxu0 0
        %769 = vmatpush1.bf16.msra.mxu0 %v711
        %770 = vmatprep.subr.bf16.mxu0 0
        %771 = vmatpush1.bf16.msra.mxu0 %v712
        %772 = vmatprep.subr.bf16.mxu0 0
        %773 = vmatpush1.bf16.msra.mxu0 %v713
        %774 = vmatprep.subr.bf16.mxu0 0
        %775 = vmatpush1.bf16.msra.mxu0 %v714
        %776 = vmatprep.subr.bf16.mxu0 0
        %777 = vmatpush1.bf16.msra.mxu0 %v715
        %778 = vmatprep.subr.bf16.mxu0 0
        %779 = vmatpush1.bf16.msra.mxu0 %v716
        %780 = vmatprep.subr.bf16.mxu0 0
        %781 = vmatpush1.bf16.msra.mxu0 %v717
        %782 = vmatprep.mubr.bf16.mxu0 %v556
        %783 = vmatmul.mubr.bf16.gmra.mrb[0].mxu0 %v555
        %v784 = vpop.f32.mrb[0].mxu0
        %v785 = vadd.f32 0.0, %v784
        %v786 = vpop.f32.mrb[0].mxu0
        %v787 = vpop.f32.mrb[0].mxu0
        %v788 = vadd.f32 0.0, %v787
        %v789 = vpop.f32.mrb[0].mxu0
        %790 = vdwg.mxu0
        %791 = vmatprep.subr.bf16.mxu0 0
        %792 = vmatpush1.bf16.msra.mxu0 %v718
        %793 = vmatprep.subr.bf16.mxu0 0
        %794 = vmatpush1.bf16.msra.mxu0 %v719
        %795 = vmatprep.subr.bf16.mxu0 0
        %796 = vmatpush1.bf16.msra.mxu0 %v720
        %797 = vmatprep.subr.bf16.mxu0 0
        %798 = vmatpush1.bf16.msra.mxu0 %v721
        %799 = vmatprep.subr.bf16.mxu0 0
        %800 = vmatpush1.bf16.msra.mxu0 %v722
        %801 = vmatprep.subr.bf16.mxu0 0
        %802 = vmatpush1.bf16.msra.mxu0 %v723
        %803 = vmatprep.subr.bf16.mxu0 0
        %804 = vmatpush1.bf16.msra.mxu0 %v724
        %805 = vmatprep.subr.bf16.mxu0 0
        %806 = vmatpush1.bf16.msra.mxu0 %v725
        %807 = vmatprep.subr.bf16.mxu0 0
        %808 = vmatpush1.bf16.msra.mxu0 0
        %809 = vmatprep.subr.bf16.mxu0 0
        %810 = vmatpush1.bf16.msra.mxu0 0
        %811 = vmatprep.subr.bf16.mxu0 0
        %812 = vmatpush1.bf16.msra.mxu0 0
        %813 = vmatprep.subr.bf16.mxu0 0
        %814 = vmatpush1.bf16.msra.mxu0 0
        %815 = vmatprep.subr.bf16.mxu0 0
        %816 = vmatpush1.bf16.msra.mxu0 0
        %817 = vmatprep.subr.bf16.mxu0 0
        %818 = vmatpush1.bf16.msra.mxu0 0
        %819 = vmatprep.subr.bf16.mxu0 0
        %820 = vmatpush1.bf16.msra.mxu0 0
        %821 = vmatprep.subr.bf16.mxu0 0
        %822 = vmatpush1.bf16.msra.mxu0 0
        %823 = vmatprep.mubr.bf16.mxu0 0
        %824 = vmatmul.mubr.bf16.gmra.mrb[0].mxu0 %v557
        %v825 = vpop.f32.mrb[0].mxu0
        %v826 = vadd.f32 %v785, %v825
        %v827 = vpop.f32.mrb[0].mxu0
        %v828 = vpop.f32.mrb[0].mxu0
        %v829 = vadd.f32 %v788, %v828
        %v830 = vpop.f32.mrb[0].mxu0
        %831 = vdwg.mxu0
        %v832 = vpack.c.bf16 %v829, %v826
        %v834 = vunpack.c.l.b16 %v832
        %v835 = vunpack.c.h.b16 %v832
        %v836 = vpack.c.b16 %v834, %v834
        %v837 = vpack.c.b16 %v835, %v835
        %840 = vst [vmem:[%s282] sm:$0xf] %v836
        %841 = vst [vmem:[%s282 + $0x4] sm:$0xf] %v837
        %s842 = sand.u32 %s124, 1
        %s843 = scalar_lea.sflag [#allocation4], %s842
        %s844 = sand.u32 %s124, 1
        %s845 = smul.addr %s844, 8
        %s846 = scalar_lea.vmem [#allocation9], %s845
        // Predicated region
        $region53: #{tpu_custom_call.1} parent=35 // pred_check
          %p847 = pneg %p134
        $region54: #{tpu_custom_call.1} parent=35 // pred_check_branch
          %849 = sbr.rel (%p847) target = $region56
        $region55: #{tpu_custom_call.1} parent=35 // pred_region
          %s850 = smul.u32 2, %s22
          %s852 = ssub.s32 128, 128
          %853 = vsyncadd %s843, %s852
          %s854 = smul.addr %s850, 64
          %s855 = scalar_lea.hbm %s4, %s854
          %s856 = sshll.u32 %s846, 4
          %s857 = int_to_ptr.vmem [resolvable:$true] %s856
          %862 = dma.vmem_to_hbm [thread:$0]  %s857, 128, %s855, %s843, 64, 64, 4
        $region56: #{tpu_custom_call.1} parent=35 // pred_fallthru
          _
      $region36: #{tpu_custom_call.1} parent=5 // pred_fallthru
        _
      %p863 = scmp.le.s32.totalorder 2, %s17
      // Predicated region
      $region57: #{tpu_custom_call.1} parent=5 // pred_check
        %p864 = pneg %p863
      $region58: #{tpu_custom_call.1} parent=5 // pred_check_branch
        %866 = sbr.rel (%p864) target = $region60
      $region59: #{tpu_custom_call.1} parent=5 // pred_region
        %s867 = ssub.s32 %s17, 2
        // Predicated region
        $region61: #{tpu_custom_call.1} parent=59 // pred_check
          %p868 = pneg %p140
        $region62: #{tpu_custom_call.1} parent=59 // pred_check_branch
          %870 = sbr.rel (%p868) target = $region64
        $region63: #{tpu_custom_call.1} parent=59 // pred_region
          %s871 = sand.u32 %s125, 1
          %s872 = scalar_lea.sflag [#allocation4], %s871
          %s873 = sand.u32 %s125, 1
          %s874 = smul.addr %s873, 8
          %s875 = scalar_lea.vmem [#allocation9], %s874
          %876 = dma.done %s872, 128
        $region64: #{tpu_custom_call.1} parent=59 // pred_fallthru
          _
      $region60: #{tpu_custom_call.1} parent=5 // pred_fallthru
        _
    $region6: #{tpu_custom_call.1} parent=1 // loop_footer
      %s21 = sadd.s32 1, %s17
    $region7: #{tpu_custom_call.1} parent=1 // loop_footer_branch
      %16 = sbr.rel target = $region3
    $region8: #{tpu_custom_call.1} parent=1 // loop_exit
      _
    %877 = vsyncpa [#allocation3], 1
    %s878 = scalar_lea.sflag [#allocation3], 1
    %879 = vsyncpa %s878, 1
    %880 = vsyncpa [#allocation6], 1
    %881 = vsyncpa [#allocation4], 1
    %s882 = scalar_lea.sflag [#allocation4], 1
    %883 = vsyncpa %s882, 1

</llo_original>
